<compile_context>
chip_gen: v5e
topology: v5e:2x2
jax: 0.10.0
libtpu: 0.0.40
codegen_flags: <defaults>
</compile_context>

<pallas_src>
import functools

import jax
import jax.numpy as jnp
import numpy as np
from jax.experimental import pallas as pl
from jax.experimental.pallas import tpu as pltpu

LANE = 128  # lane width: padding granularity for lane-dense vregs / stores


def _round_up(v, m):
    return (v + m - 1) // m * m


# ---------------------------------------------------------------------------
# Fused Pallas kernel: the ENTIRE GCN forward in one invocation.
#
#   layer l: h = A_l @ (h @ W_l) + b_l     (A_l alternates adj / r_adj)
#            or (A_l @ h) @ W_l + b_l when c_out > c_in (fewer MXU FLOPs)
#            h = LeakyReLU_0.2(h)          (all but the last layer)
#   output : F.normalize(h)                (row-wise L2, eps=1e-12)
# ---------------------------------------------------------------------------
def _gcn_fused_kernel(*refs, relu_flags, expand_flags):
    num_layers = len(relu_flags)
    # refs = (adj_hbm, r_adj_hbm, x, w0, b0, ..., w_{L-1}, b_{L-1},
    #         o_ref, adj_buf, r_adj_buf, sem)
    adj_hbm = refs[0]                       # HBM ref, bf16 (n_pad, n_pad)
    r_adj_hbm = refs[1]                     # HBM ref, bf16 (n_pad, n_pad)
    x_ref = refs[2]                         # bf16 (n_pad, c0_pad)
    o_ref = refs[3 + 2 * num_layers]
    adj_buf = refs[4 + 2 * num_layers]      # VMEM scratch, bf16
    r_adj_buf = refs[5 + 2 * num_layers]    # VMEM scratch, bf16
    sem = refs[6 + 2 * num_layers]          # DMA semaphores (2,)

    # Kick off both adjacency DMAs up front; r_adj's copy (and adj's, for a
    # non-expanding layer 0) overlaps with compute below.
    adj_cp = pltpu.make_async_copy(adj_hbm, adj_buf, sem.at[0])
    r_adj_cp = pltpu.make_async_copy(r_adj_hbm, r_adj_buf, sem.at[1])
    adj_cp.start()
    if num_layers >= 2:          # r_adj is only ever used from layer 1 onward
        r_adj_cp.start()

    waited = [False, False]

    def load_a(use_adj):
        idx = 0 if use_adj else 1
        if not waited[idx]:
            (adj_cp if use_adj else r_adj_cp).wait()
            waited[idx] = True
        return (adj_buf if use_adj else r_adj_buf)[...]

    h = x_ref[...]               # bf16 activation, resident in vregs/VMEM
    hout = None                  # f32 output of the current layer
    for l in range(num_layers):
        w = refs[3 + 2 * l][...]     # bf16 (cin_pad, cout_pad)
        b = refs[4 + 2 * l][...]     # f32  (1, cout_pad) — broadcasts over rows
        use_adj = (l % 2 == 0)       # alternate adj / r_adj as in GCN.forward

        if expand_flags[l]:
            # c_out > c_in: (A @ h) @ W keeps the n^2 matmul at width c_in.
            a = load_a(use_adj)
            ah = jnp.dot(a, h, preferred_element_type=jnp.float32)
            hout = jnp.dot(ah.astype(jnp.bfloat16), w,
                           preferred_element_type=jnp.float32) + b
        else:
            # c_out <= c_in: A @ (h @ W); h@W also overlaps the adjacency DMA.
            xw = jnp.dot(h, w, preferred_element_type=jnp.float32)
            a = load_a(use_adj)
            hout = jnp.dot(a, xw.astype(jnp.bfloat16),
                           preferred_element_type=jnp.float32) + b

        if relu_flags[l]:
            hout = jnp.maximum(hout, 0.2 * hout)   # LeakyReLU(0.2), f32
        if l < num_layers - 1:
            h = hout.astype(jnp.bfloat16)          # bf16 residency between layers

    # F.normalize: x / max(||x||_2, 1e-12) == x * rsqrt(max(sum(x^2), 1e-24))
    ssq = jnp.sum(hout * hout, axis=1, keepdims=True)
    hout = hout * jax.lax.rsqrt(jnp.maximum(ssq, 1e-24))
    o_ref[...] = hout.astype(o_ref.dtype)


def gcn_forward(x, adj, r_adj, params):
    """Whole-GCN forward as a single fused, VMEM-resident Pallas kernel."""
    n, in_c = x.shape
    out_c = params[-1][0].shape[1]
    num_layers = len(params)

    n_pad = _round_up(n, LANE)
    widths = [in_c] + [w.shape[1] for (w, _, _) in params]
    widths_pad = [_round_up(c, LANE) for c in widths]

    def pad2(arr, rows, cols, dtype):
        arr = jnp.asarray(arr, dtype)
        return jnp.pad(arr, ((0, rows - arr.shape[0]), (0, cols - arr.shape[1])))

    operands = [
        pad2(adj, n_pad, n_pad, jnp.bfloat16),        # adj   (stays in HBM)
        pad2(r_adj, n_pad, n_pad, jnp.bfloat16),      # r_adj (stays in HBM)
        pad2(x, n_pad, widths_pad[0], jnp.bfloat16),  # activation (bf16)
    ]
    relu_flags, expand_flags = [], []
    for i, (w, b, relu) in enumerate(params):
        operands.append(pad2(w, widths_pad[i], widths_pad[i + 1], jnp.bfloat16))
        b2d = jnp.asarray(b, jnp.float32).reshape(1, -1)
        operands.append(pad2(b2d, 1, widths_pad[i + 1], jnp.float32))
        relu_flags.append(bool(relu))
        # Unpadded-width decision; whenever padded costs differ it picks the
        # cheaper adjacency-matmul width.
        expand_flags.append(widths[i + 1] > widths[i])

    # Generation-aware VMEM budget (v7x: 64 MiB, v5e/v6e: 128 MiB per core).
    try:
        vmem_capacity = int(pltpu.get_tpu_info().vmem_capacity_bytes)
    except Exception:
        vmem_capacity = 64 * 1024 * 1024   # conservative fallback (v7x)
    vmem_budget = int(0.75 * vmem_capacity)

    # Working-set estimate: scratch adjacencies + inputs + output + a few live
    # activations the compiler keeps between layers.
    max_w = max(widths_pad)
    est_bytes = 2 * n_pad * n_pad * 2                        # adj/r_adj scratch
    est_bytes += n_pad * widths_pad[0] * 2                   # x (bf16)
    for i in range(num_layers):
        est_bytes += widths_pad[i] * widths_pad[i + 1] * 2   # W (bf16)
        est_bytes += 8 * widths_pad[i + 1] * 4               # bias (sublane-padded)
    est_bytes += n_pad * widths_pad[-1] * 4                  # output (f32)
    est_bytes += n_pad * max_w * (4 + 4 + 2)                 # live f32/f32/bf16 acts
    assert est_bytes <= vmem_budget, (
        f"fused GCN working set ~{est_bytes / 2**20:.1f} MiB exceeds the "
        f"{vmem_budget / 2**20:.0f} MiB VMEM budget on this generation; use a "
        "tiled / sparse path for graphs this large")

    in_specs = (
        [pl.BlockSpec(memory_space=pl.ANY)] * 2   # adj, r_adj stay in HBM
        + [pl.BlockSpec(memory_space=pltpu.MemorySpace.VMEM)]
        * (len(operands) - 2)
    )

    kernel = functools.partial(
        _gcn_fused_kernel,
        relu_flags=tuple(relu_flags),
        expand_flags=tuple(expand_flags),
    )
    out_pad = pl.pallas_call(
        kernel,
        out_shape=jax.ShapeDtypeStruct((n_pad, widths_pad[-1]), jnp.float32),
        in_specs=in_specs,
        out_specs=pl.BlockSpec(memory_space=pltpu.MemorySpace.VMEM),
        scratch_shapes=[
            pltpu.VMEM((n_pad, n_pad), jnp.bfloat16),   # adj buffer
            pltpu.VMEM((n_pad, n_pad), jnp.bfloat16),   # r_adj buffer
            pltpu.SemaphoreType.DMA((2,)),
        ],
        compiler_params=pltpu.CompilerParams(vmem_limit_bytes=vmem_budget),
    )(*operands)
    return out_pad[:n, :out_c]


# ---------------------------------------------------------------------------
# Graph / parameter setup (plain JAX / numpy glue)
# ---------------------------------------------------------------------------
def build_normalized_adjs(n, edges):
    """Dense equivalents of normt_spm(adj, 'in') and normt_spm(adj.T, 'in')."""
    edges = np.asarray(edges)
    adj = np.zeros((n, n), dtype=np.float32)
    adj[edges[:, 0], edges[:, 1]] = 1.0  # coo_matrix with ones

    def row_normalize(mx):
        rowsum = mx.sum(axis=1)
        r_inv = np.where(rowsum > 0, 1.0 / np.where(rowsum > 0, rowsum, 1.0), 0.0)
        return (r_inv[:, None] * mx).astype(np.float32)

    # normt_spm(mx, 'in') transposes first, then row-normalizes.
    adj_norm = row_normalize(adj.T)     # self.adj
    r_adj_norm = row_normalize(adj)     # self.r_adj
    return jnp.asarray(adj_norm), jnp.asarray(r_adj_norm)


def parse_hidden_layers(hidden_layers):
    """Mirror GCN.__init__ parsing; 'd' dropout flags are identity in eval."""
    hl = hidden_layers.split(',')
    if hl[-1] == 'd':
        hl = hl[:-1]
    widths = []
    for c in hl:
        if c and c[0] == 'd':
            c = c[1:]
        widths.append(int(c))
    return widths


def xavier_uniform(key, in_c, out_c):
    bound = float(np.sqrt(6.0 / (in_c + out_c)))
    return jax.random.uniform(key, (in_c, out_c), jnp.float32, -bound, bound)


def init_gcn_params(key, in_channels, out_channels, hidden_widths):
    """Returns list of (W, b, relu); last layer has relu=False (as in GCN)."""
    params = []
    last_c = in_channels
    widths = list(hidden_widths) + [out_channels]
    for i, c in enumerate(widths):
        key, sub = jax.random.split(key)
        w = xavier_uniform(sub, last_c, c)
        b = jnp.zeros((c,), jnp.float32)
        relu = i < len(widths) - 1
        params.append((w, b, relu))
        last_c = c
    return params


# ---------------------------------------------------------------------------
# References (pure JAX) for sanity checks
# ---------------------------------------------------------------------------
def gcn_forward_ref_matched(x, adj, r_adj, params):
    """Same math as the kernel: bf16 MXU operands / residency, f32 acc,
    same per-layer association order."""
    adj = adj.astype(jnp.bfloat16)
    r_adj = r_adj.astype(jnp.bfloat16)
    num_layers = len(params)
    h = jnp.asarray(x, jnp.float32).astype(jnp.bfloat16)
    hout = None
    for l, (w, b, relu) in enumerate(params):
        a = adj if l % 2 == 0 else r_adj
        wb = w.astype(jnp.bfloat16)
        if w.shape[1] > w.shape[0]:
            ah = jnp.dot(a, h, preferred_element_type=jnp.float32)
            hout = jnp.dot(ah.astype(jnp.bfloat16), wb,
                           preferred_element_type=jnp.float32) + b
        else:
            xw = jnp.dot(h, wb, preferred_element_type=jnp.float32)
            hout = jnp.dot(a, xw.astype(jnp.bfloat16),
                           preferred_element_type=jnp.float32) + b
        if relu:
            hout = jnp.maximum(hout, 0.2 * hout)
        if l < num_layers - 1:
            h = hout.astype(jnp.bfloat16)
    ssq = jnp.sum(hout * hout, axis=1, keepdims=True)
    return hout * jax.lax.rsqrt(jnp.maximum(ssq, 1e-24))


def gcn_forward_ref_f32(x, adj, r_adj, params):
    """Full-precision reference matching the original torch module."""
    h = jnp.asarray(x, jnp.float32)
    graph_side = True
    for w, b, relu in params:
        a = adj if graph_side else r_adj
        h = a @ (h @ w) + b
        if relu:
            h = jnp.where(h >= 0, h, 0.2 * h)
        graph_side = not graph_side
    norm = jnp.sqrt(jnp.sum(h * h, axis=1, keepdims=True))
    return h / jnp.maximum(norm, 1e-12)


if __name__ == "__main__":
    # Small deterministic example: n=16 nodes, in=32, hidden="64", out=16.
    # (32 -> 64 exercises the (A@h)@W expanding branch, 64 -> 16 the A@(hW) one.)
    n = 16
    in_channels = 32
    out_channels = 16
    hidden_layers = "64"   # same string format as the torch GCN module

    rng = np.random.default_rng(0)
    # Random directed edges (plus a ring so every node has in/out degree > 0)
    ring = [(i, (i + 1) % n) for i in range(n)]
    extra = [(int(rng.integers(0, n)), int(rng.integers(0, n))) for _ in range(24)]
    edges = ring + extra

    adj, r_adj = build_normalized_adjs(n, edges)

    key = jax.random.PRNGKey(0)
    key, kx, kp = jax.random.split(key, 3)
    x = jax.random.normal(kx, (n, in_channels), jnp.float32)
    params = init_gcn_params(kp, in_channels, out_channels,
                             parse_hidden_layers(hidden_layers))

    out = gcn_forward(x, adj, r_adj, params)
    out = jax.block_until_ready(out)
    assert out.shape == (n, out_channels)

    # Exact-math check against a reference doing the identical bf16/f32 mix.
    ref_m = gcn_forward_ref_matched(x, adj, r_adj, params)
    np.testing.assert_allclose(np.asarray(out), np.asarray(ref_m),
                               rtol=1e-4, atol=1e-4)

    # Loose sanity check against the full-f32 reference (bf16 MXU operands).
    ref_f = gcn_forward_ref_f32(x, adj, r_adj, params)
    np.testing.assert_allclose(np.asarray(out), np.asarray(ref_f),
                               rtol=5e-2, atol=5e-2)

    print("KERNEL_OK")
</pallas_src>

<mosaic_0001>
module attributes {stable_mosaic.version = 11 : i64} {
  func.func @_gcn_fused_kernel(%arg0: memref<128x128xbf16, #tpu.memory_space<any>>, %arg1: memref<128x128xbf16, #tpu.memory_space<any>>, %arg2: memref<128x128xbf16, #tpu.memory_space<vmem>>, %arg3: memref<128x128xbf16, #tpu.memory_space<vmem>>, %arg4: memref<1x128xf32, #tpu.memory_space<vmem>>, %arg5: memref<128x128xbf16, #tpu.memory_space<vmem>>, %arg6: memref<1x128xf32, #tpu.memory_space<vmem>>, %arg7: memref<128x128xf32, #tpu.memory_space<vmem>>, %arg8: memref<128x128xbf16, #tpu.memory_space<vmem>>, %arg9: memref<128x128xbf16, #tpu.memory_space<vmem>>, %arg10: memref<2x!tpu.dma_semaphore, #tpu.memory_space<semaphore_mem>>) attributes {dimension_semantics = [], scalar_prefetch = 0 : i64, scratch_operands = 3 : i64, tpu.core_type = #tpu.core_type<tc>} {
    %c0_i32 = arith.constant 0 : i32
    %0 = tpu.memref_slice %arg10[%c0_i32] : memref<2x!tpu.dma_semaphore, #tpu.memory_space<semaphore_mem>> -> memref<1x!tpu.dma_semaphore, #tpu.memory_space<semaphore_mem>>
    %1 = tpu.memref_squeeze %0 : memref<1x!tpu.dma_semaphore, #tpu.memory_space<semaphore_mem>> -> memref<!tpu.dma_semaphore, #tpu.memory_space<semaphore_mem>>
    tpu.enqueue_dma source(%arg0 : memref<128x128xbf16, #tpu.memory_space<any>>) target(%arg8 : memref<128x128xbf16, #tpu.memory_space<vmem>>) target_semaphore(%1 : memref<!tpu.dma_semaphore, #tpu.memory_space<semaphore_mem>>)
    %c1_i32 = arith.constant 1 : i32
    %2 = tpu.memref_slice %arg10[%c1_i32] : memref<2x!tpu.dma_semaphore, #tpu.memory_space<semaphore_mem>> -> memref<1x!tpu.dma_semaphore, #tpu.memory_space<semaphore_mem>>
    %3 = tpu.memref_squeeze %2 : memref<1x!tpu.dma_semaphore, #tpu.memory_space<semaphore_mem>> -> memref<!tpu.dma_semaphore, #tpu.memory_space<semaphore_mem>>
    tpu.enqueue_dma source(%arg1 : memref<128x128xbf16, #tpu.memory_space<any>>) target(%arg9 : memref<128x128xbf16, #tpu.memory_space<vmem>>) target_semaphore(%3 : memref<!tpu.dma_semaphore, #tpu.memory_space<semaphore_mem>>)
    %c0 = arith.constant 0 : index
    %c0_0 = arith.constant 0 : index
    %4 = vector.load %arg2[%c0, %c0_0] : memref<128x128xbf16, #tpu.memory_space<vmem>>, vector<128x128xbf16>
    %c0_1 = arith.constant 0 : index
    %c0_2 = arith.constant 0 : index
    %5 = vector.load %arg3[%c0_1, %c0_2] : memref<128x128xbf16, #tpu.memory_space<vmem>>, vector<128x128xbf16>
    %c0_3 = arith.constant 0 : index
    %c0_4 = arith.constant 0 : index
    %6 = vector.load %arg4[%c0_3, %c0_4] : memref<1x128xf32, #tpu.memory_space<vmem>>, vector<1x128xf32>
    %c0_i32_5 = arith.constant 0 : i32
    %7 = tpu.memref_slice %arg10[%c0_i32_5] : memref<2x!tpu.dma_semaphore, #tpu.memory_space<semaphore_mem>> -> memref<1x!tpu.dma_semaphore, #tpu.memory_space<semaphore_mem>>
    %8 = tpu.memref_squeeze %7 : memref<1x!tpu.dma_semaphore, #tpu.memory_space<semaphore_mem>> -> memref<!tpu.dma_semaphore, #tpu.memory_space<semaphore_mem>>
    tpu.wait_dma2 semaphore(%8 : memref<!tpu.dma_semaphore, #tpu.memory_space<semaphore_mem>>) src(%arg0 : memref<128x128xbf16, #tpu.memory_space<any>>) dst(%arg8 : memref<128x128xbf16, #tpu.memory_space<vmem>>)
    %c0_6 = arith.constant 0 : index
    %c0_7 = arith.constant 0 : index
    %9 = vector.load %arg8[%c0_6, %c0_7] : memref<128x128xbf16, #tpu.memory_space<vmem>>, vector<128x128xbf16>
    %cst = arith.constant dense<0.000000e+00> : vector<128x128xf32>
    %10 = tpu.matmul %9, %4, %cst {dimension_numbers = #tpu.dot_dimension_numbers<[1], [0], [0], [1], [0, 0, 1, 1], [], []>} : vector<128x128xbf16>, vector<128x128xbf16>, vector<128x128xf32> -> vector<128x128xf32>
    %11 = arith.truncf %10 : vector<128x128xf32> to vector<128x128xbf16>
    %cst_8 = arith.constant dense<0.000000e+00> : vector<128x128xf32>
    %12 = tpu.matmul %11, %5, %cst_8 {dimension_numbers = #tpu.dot_dimension_numbers<[1], [0], [0], [1], [0, 0, 1, 1], [], []>} : vector<128x128xbf16>, vector<128x128xbf16>, vector<128x128xf32> -> vector<128x128xf32>
    %13 = vector.broadcast %6 : vector<1x128xf32> to vector<128x128xf32>
    %14 = arith.addf %12, %13 : vector<128x128xf32>
    %cst_9 = arith.constant 2.000000e-01 : f32
    %15 = vector.broadcast %cst_9 : f32 to vector<128x128xf32>
    %16 = arith.mulf %15, %14 : vector<128x128xf32>
    %17 = arith.maximumf %14, %16 : vector<128x128xf32>
    %18 = arith.truncf %17 : vector<128x128xf32> to vector<128x128xbf16>
    %c0_10 = arith.constant 0 : index
    %c0_11 = arith.constant 0 : index
    %19 = vector.load %arg5[%c0_10, %c0_11] : memref<128x128xbf16, #tpu.memory_space<vmem>>, vector<128x128xbf16>
    %c0_12 = arith.constant 0 : index
    %c0_13 = arith.constant 0 : index
    %20 = vector.load %arg6[%c0_12, %c0_13] : memref<1x128xf32, #tpu.memory_space<vmem>>, vector<1x128xf32>
    %cst_14 = arith.constant dense<0.000000e+00> : vector<128x128xf32>
    %21 = tpu.matmul %18, %19, %cst_14 {dimension_numbers = #tpu.dot_dimension_numbers<[1], [0], [0], [1], [0, 0, 1, 1], [], []>} : vector<128x128xbf16>, vector<128x128xbf16>, vector<128x128xf32> -> vector<128x128xf32>
    %c1_i32_15 = arith.constant 1 : i32
    %22 = tpu.memref_slice %arg10[%c1_i32_15] : memref<2x!tpu.dma_semaphore, #tpu.memory_space<semaphore_mem>> -> memref<1x!tpu.dma_semaphore, #tpu.memory_space<semaphore_mem>>
    %23 = tpu.memref_squeeze %22 : memref<1x!tpu.dma_semaphore, #tpu.memory_space<semaphore_mem>> -> memref<!tpu.dma_semaphore, #tpu.memory_space<semaphore_mem>>
    tpu.wait_dma2 semaphore(%23 : memref<!tpu.dma_semaphore, #tpu.memory_space<semaphore_mem>>) src(%arg1 : memref<128x128xbf16, #tpu.memory_space<any>>) dst(%arg9 : memref<128x128xbf16, #tpu.memory_space<vmem>>)
    %c0_16 = arith.constant 0 : index
    %c0_17 = arith.constant 0 : index
    %24 = vector.load %arg9[%c0_16, %c0_17] : memref<128x128xbf16, #tpu.memory_space<vmem>>, vector<128x128xbf16>
    %25 = arith.truncf %21 : vector<128x128xf32> to vector<128x128xbf16>
    %cst_18 = arith.constant dense<0.000000e+00> : vector<128x128xf32>
    %26 = tpu.matmul %24, %25, %cst_18 {dimension_numbers = #tpu.dot_dimension_numbers<[1], [0], [0], [1], [0, 0, 1, 1], [], []>} : vector<128x128xbf16>, vector<128x128xbf16>, vector<128x128xf32> -> vector<128x128xf32>
    %27 = vector.broadcast %20 : vector<1x128xf32> to vector<128x128xf32>
    %28 = arith.addf %26, %27 : vector<128x128xf32>
    %29 = arith.mulf %28, %28 : vector<128x128xf32>
    %cst_19 = arith.constant dense<0.000000e+00> : vector<128xf32>
    %30 = vector.multi_reduction <add>, %29, %cst_19 [1] : vector<128x128xf32> to vector<128xf32>
    %31 = vector.shape_cast %30 : vector<128xf32> to vector<128x1xf32>
    %cst_20 = arith.constant 1.000000e-24 : f32
    %32 = vector.broadcast %cst_20 : f32 to vector<128x1xf32>
    %33 = arith.maximumf %31, %32 : vector<128x1xf32>
    %34 = math.rsqrt %33 : vector<128x1xf32>
    %35 = vector.broadcast %34 : vector<128x1xf32> to vector<128x128xf32>
    %36 = arith.mulf %28, %35 : vector<128x128xf32>
    %c0_21 = arith.constant 0 : index
    %c0_22 = arith.constant 0 : index
    %37 = vector.load %arg7[%c0_21, %c0_22] : memref<128x128xf32, #tpu.memory_space<vmem>>, vector<128x128xf32>
    tpu.vector_store %arg7[%c0_21, %c0_22], %36 {strides = array<i32>} : memref<128x128xf32, #tpu.memory_space<vmem>>, vector<128x128xf32>,
    return
  }
}

</mosaic_0001>

<llo_original>
// kernel: tpu_custom_call.1
$region0: #{tpu_custom_call.1}
  #allocation0 [shape = 'u32[]', space=smem, size = 0x4, offset = 0x4, fixed_abs, tag = 'smem constant byte address 0x4 - core index']
  #allocation1 [shape = 'u32[72,128]{1,0:T(1,128)}', space=vmem, size = 0x9000, scoped, tag = 'internal scratch']
  #allocation2 [shape = 'bf16[128,128]{1,0:T(8,128)(2,1)}', space=vmem, size = 0x8000, scoped, tag = 'scratch operand']
  #allocation3 [shape = 'bf16[128,128]{1,0:T(8,128)(2,1)}', space=vmem, size = 0x8000, scoped, tag = 'scratch operand']
  #allocation4 [shape = 's32[2]{0}', space=sflag, size = 0x8, scoped, tag = 'scratch operand']
  #allocation12 [shape = 's32[]', space=sflag, size = 0x4, offset = 0, fixed_abs, tag = 'sflag constant byte address 0x0 - dummy sync flag']
  #allocation13 [shape = 's32[]', space=sflag, size = 0x4, offset = 0, fixed_abs, tag = 'sflag constant byte address 0x0 - dummy sync flag']
  #allocation14 [shape = 'u32[]', space=smem, size = 0x4, offset = 0x44, fixed_abs, tag = 'smem constant byte address 0x44 - assertion arg 0']
  #allocation15 [shape = 'u32[]', space=smem, size = 0x4, offset = 0x48, fixed_abs, tag = 'smem constant byte address 0x48 - assertion arg 1']
  #allocation16 [shape = 's32[]', space=sflag, size = 0x4, offset = 0, fixed_abs, tag = 'sflag constant byte address 0x0 - dummy sync flag']
  #allocation17 [shape = 's32[]', space=sflag, size = 0x4, offset = 0, fixed_abs, tag = 'sflag constant byte address 0x0 - dummy sync flag']
  %s0 = inlined_call_operand.hbm [shape: bf16[128,128], index: 0, kind: input, shape index: {}]
  %s1 = inlined_call_operand.hbm [shape: bf16[128,128], index: 1, kind: input, shape index: {}]
  %s2 = inlined_call_operand.hbm [shape: bf16[128,128], index: 2, kind: input, shape index: {}]
  %s3 = inlined_call_operand.hbm [shape: bf16[128,128], index: 3, kind: input, shape index: {}]
  %s4 = inlined_call_operand.vmem [shape: f32[1,128], index: 4, kind: input, shape index: {}]
  %s5 = inlined_call_operand.hbm [shape: bf16[128,128], index: 5, kind: input, shape index: {}]
  %s6 = inlined_call_operand.vmem [shape: f32[1,128], index: 6, kind: input, shape index: {}]
  %s7 = inlined_call_operand.hbm [shape: f32[128,128], index: 7, kind: output, shape index: {}]
  %s8 = sld [smem:[#allocation0]]
  $region50: #{tpu_custom_call.1} parent=0
    _
  %s10 = ssub.s32 1, %s8
  %s11 = scalar_select 0, %s10, %s8
  $region1: #{tpu_custom_call.1} parent=0
    #allocation5 [shape = 'u8[32768]{0}', space=vmem, size = 0x8000, scoped, tag = 'input window, operand 2, single buffered']
    #allocation6 [shape = 's32[1]{0}', space=sflag, size = 0x4, scoped, tag = 'scoped memory for tpu_custom_call.1']
    #allocation7 [shape = 's32[1]{0}', space=sflag, size = 0x4, scoped, tag = 'scoped memory for tpu_custom_call.1']
    #allocation8 [shape = 'u8[32768]{0}', space=vmem, size = 0x8000, scoped, tag = 'input window, operand 3, single buffered']
    #allocation9 [shape = 's32[1]{0}', space=sflag, size = 0x4, scoped, tag = 'scoped memory for tpu_custom_call.1']
    #allocation10 [shape = 'u8[32768]{0}', space=vmem, size = 0x8000, scoped, tag = 'input window, operand 5, single buffered']
    #allocation11 [shape = 'u8[65536]{0}', space=vmem, size = 0x10000, scoped, tag = 'output window, operand 0, single buffered']
    %12 = vsyncpa [#allocation6], 0
    %13 = vsyncpa [#allocation9], 0
    %14 = vsyncpa [#allocation7], 0
    // Predicated region
    $region2: #{tpu_custom_call.1} parent=1 // pred_check
      _
    $region3: #{tpu_custom_call.1} parent=1 // pred_check_branch
      %16 = sbr.rel (0) target = $region5
    $region4: #{tpu_custom_call.1} parent=1 // pred_region
      %18 = vsyncadd [#allocation6], 0
      %s19 = sshll.u32 %s2, 4
      %s20 = int_to_ptr.hbm [resolvable:$true] %s19
      %s21 = sshll.u32 [#allocation5], 4
      %s22 = int_to_ptr.vmem [resolvable:$true] %s21
      %27 = dma.hbm_to_vmem [thread:$0]  %s20, 1024, %s22, [#allocation6], 64, 64, 4
    $region5: #{tpu_custom_call.1} parent=1 // pred_fallthru
      _
    // Predicated region
    $region6: #{tpu_custom_call.1} parent=1 // pred_check
      _
    $region7: #{tpu_custom_call.1} parent=1 // pred_check_branch
      %29 = sbr.rel (0) target = $region9
    $region8: #{tpu_custom_call.1} parent=1 // pred_region
      %31 = vsyncadd [#allocation9], 0
      %s32 = sshll.u32 %s3, 4
      %s33 = int_to_ptr.hbm [resolvable:$true] %s32
      %s34 = sshll.u32 [#allocation8], 4
      %s35 = int_to_ptr.vmem [resolvable:$true] %s34
      %40 = dma.hbm_to_vmem [thread:$0]  %s33, 1024, %s35, [#allocation9], 64, 64, 4
    $region9: #{tpu_custom_call.1} parent=1 // pred_fallthru
      _
    // Predicated region
    $region10: #{tpu_custom_call.1} parent=1 // pred_check
      _
    $region11: #{tpu_custom_call.1} parent=1 // pred_check_branch
      %42 = sbr.rel (0) target = $region13
    $region12: #{tpu_custom_call.1} parent=1 // pred_region
      _
    $region13: #{tpu_custom_call.1} parent=1 // pred_fallthru
      _
    // Predicated region
    $region14: #{tpu_custom_call.1} parent=1 // pred_check
      _
    $region15: #{tpu_custom_call.1} parent=1 // pred_check_branch
      %44 = sbr.rel (0) target = $region17
    $region16: #{tpu_custom_call.1} parent=1 // pred_region
      %46 = vsyncadd [#allocation9], 0
      %s47 = sshll.u32 %s5, 4
      %s48 = int_to_ptr.hbm [resolvable:$true] %s47
      %s49 = sshll.u32 [#allocation10], 4
      %s50 = int_to_ptr.vmem [resolvable:$true] %s49
      %55 = dma.hbm_to_vmem [thread:$0]  %s48, 1024, %s50, [#allocation9], 64, 64, 4
    $region17: #{tpu_custom_call.1} parent=1 // pred_fallthru
      _
    // Predicated region
    $region18: #{tpu_custom_call.1} parent=1 // pred_check
      _
    $region19: #{tpu_custom_call.1} parent=1 // pred_check_branch
      %57 = sbr.rel (0) target = $region21
    $region20: #{tpu_custom_call.1} parent=1 // pred_region
      _
    $region21: #{tpu_custom_call.1} parent=1 // pred_fallthru
      _
    // Predicated region
    $region22: #{tpu_custom_call.1} parent=1 // pred_check
      _
    $region23: #{tpu_custom_call.1} parent=1 // pred_check_branch
      %59 = sbr.rel (0) target = $region25
    $region24: #{tpu_custom_call.1} parent=1 // pred_region
      %61 = dma.done [#allocation6], 1024
    $region25: #{tpu_custom_call.1} parent=1 // pred_fallthru
      _
    // Predicated region
    $region26: #{tpu_custom_call.1} parent=1 // pred_check
      _
    $region27: #{tpu_custom_call.1} parent=1 // pred_check_branch
      %63 = sbr.rel (0) target = $region29
    $region28: #{tpu_custom_call.1} parent=1 // pred_region
      %65 = dma.done [#allocation9], 1024
    $region29: #{tpu_custom_call.1} parent=1 // pred_fallthru
      _
    // Predicated region
    $region30: #{tpu_custom_call.1} parent=1 // pred_check
      _
    $region31: #{tpu_custom_call.1} parent=1 // pred_check_branch
      %67 = sbr.rel (0) target = $region33
    $region32: #{tpu_custom_call.1} parent=1 // pred_region
      %69 = dma.done [#allocation9], 1024
    $region33: #{tpu_custom_call.1} parent=1 // pred_fallthru
      _
    // Predicated region
    $region34: #{tpu_custom_call.1} parent=1 // pred_check
      _
    $region35: #{tpu_custom_call.1} parent=1 // pred_check_branch
      %71 = sbr.rel target = $region37
    $region36: #{tpu_custom_call.1} parent=1 // pred_region
      %72 = sst [smem:[#allocation14]] [#allocation13]
      %73 = sst [smem:[#allocation15]] [#allocation12]
    $region37: #{tpu_custom_call.1} parent=1 // pred_fallthru
      _
    %75 = shalt.err (0)
    %s77 = sshll.u32 %s0, 4
    %s78 = int_to_ptr.hbm [resolvable:$true] %s77
    %s79 = sshll.u32 [#allocation2], 4
    %s80 = int_to_ptr.vmem [resolvable:$true] %s79
    %82 = dma.hbm_to_vmem [thread:$0]  %s78, 1024, %s80, [#allocation4]
    %s83 = scalar_lea.sflag [#allocation4], 1
    // Predicated region
    $region38: #{tpu_custom_call.1} parent=1 // pred_check
      _
    $region39: #{tpu_custom_call.1} parent=1 // pred_check_branch
      %85 = sbr.rel target = $region41
    $region40: #{tpu_custom_call.1} parent=1 // pred_region
      %86 = sst [smem:[#allocation14]] [#allocation17]
      %87 = sst [smem:[#allocation15]] [#allocation16]
    $region41: #{tpu_custom_call.1} parent=1 // pred_fallthru
      _
    %89 = shalt.err (0)
    %s91 = sshll.u32 %s1, 4
    %s92 = int_to_ptr.hbm [resolvable:$true] %s91
    %s93 = sshll.u32 [#allocation3], 4
    %s94 = int_to_ptr.vmem [resolvable:$true] %s93
    %96 = dma.hbm_to_vmem [thread:$0]  %s92, 1024, %s94, %s83
    %v97 = vld [vmem:[#allocation5] sm:$0xf]
    %v98 = vld [vmem:[#allocation5 + $0x4] sm:$0xf]
    %v99 = vld [vmem:[#allocation5 + $0x8] sm:$0xf]
    %v100 = vld [vmem:[#allocation5 + $0xc] sm:$0xf]
    %v101 = vld [vmem:[#allocation5 + $0x10] sm:$0xf]
    %v102 = vld [vmem:[#allocation5 + $0x14] sm:$0xf]
    %v103 = vld [vmem:[#allocation5 + $0x18] sm:$0xf]
    %v104 = vld [vmem:[#allocation5 + $0x1c] sm:$0xf]
    %v105 = vld [vmem:[#allocation5 + $0x20] sm:$0xf]
    %v106 = vld [vmem:[#allocation5 + $0x24] sm:$0xf]
    %v107 = vld [vmem:[#allocation5 + $0x28] sm:$0xf]
    %v108 = vld [vmem:[#allocation5 + $0x2c] sm:$0xf]
    %v109 = vld [vmem:[#allocation5 + $0x30] sm:$0xf]
    %v110 = vld [vmem:[#allocation5 + $0x34] sm:$0xf]
    %v111 = vld [vmem:[#allocation5 + $0x38] sm:$0xf]
    %v112 = vld [vmem:[#allocation5 + $0x3c] sm:$0xf]
    %v113 = vld [vmem:[#allocation8] sm:$0xf]
    %v114 = vld [vmem:[#allocation8 + $0x4] sm:$0xf]
    %v115 = vld [vmem:[#allocation8 + $0x8] sm:$0xf]
    %v116 = vld [vmem:[#allocation8 + $0xc] sm:$0xf]
    %v117 = vld [vmem:[#allocation8 + $0x10] sm:$0xf]
    %v118 = vld [vmem:[#allocation8 + $0x14] sm:$0xf]
    %v119 = vld [vmem:[#allocation8 + $0x18] sm:$0xf]
    %v120 = vld [vmem:[#allocation8 + $0x1c] sm:$0xf]
    %v121 = vld [vmem:[#allocation8 + $0x20] sm:$0xf]
    %v122 = vld [vmem:[#allocation8 + $0x24] sm:$0xf]
    %v123 = vld [vmem:[#allocation8 + $0x28] sm:$0xf]
    %v124 = vld [vmem:[#allocation8 + $0x2c] sm:$0xf]
    %v125 = vld [vmem:[#allocation8 + $0x30] sm:$0xf]
    %v126 = vld [vmem:[#allocation8 + $0x34] sm:$0xf]
    %v127 = vld [vmem:[#allocation8 + $0x38] sm:$0xf]
    %v128 = vld [vmem:[#allocation8 + $0x3c] sm:$0xf]
    %v129 = vld [vmem:[%s4] sm:$0x1]
    %s130 = smul.u32 4, 16
    %s131 = smul.u32 %s130, 1
    %s132 = sshll.u32 %s131, 4
    %133 = dma.done [#allocation4], %s132
    %v134 = vld [vmem:[#allocation2] sm:$0xf]
    %v135 = vld [vmem:[#allocation2 + $0x4] sm:$0xf]
    %v136 = vld [vmem:[#allocation2 + $0x8] sm:$0xf]
    %v137 = vld [vmem:[#allocation2 + $0xc] sm:$0xf]
    %v138 = vld [vmem:[#allocation2 + $0x10] sm:$0xf]
    %v139 = vld [vmem:[#allocation2 + $0x14] sm:$0xf]
    %v140 = vld [vmem:[#allocation2 + $0x18] sm:$0xf]
    %v141 = vld [vmem:[#allocation2 + $0x1c] sm:$0xf]
    %v142 = vld [vmem:[#allocation2 + $0x20] sm:$0xf]
    %v143 = vld [vmem:[#allocation2 + $0x24] sm:$0xf]
    %v144 = vld [vmem:[#allocation2 + $0x28] sm:$0xf]
    %v145 = vld [vmem:[#allocation2 + $0x2c] sm:$0xf]
    %v146 = vld [vmem:[#allocation2 + $0x30] sm:$0xf]
    %v147 = vld [vmem:[#allocation2 + $0x34] sm:$0xf]
    %v148 = vld [vmem:[#allocation2 + $0x38] sm:$0xf]
    %v149 = vld [vmem:[#allocation2 + $0x3c] sm:$0xf]
    %v166 = vunpack.c.l.b16 %v134
    %v167 = vunpack.c.l.b16 %v135
    %v168 = vunpack.c.l.b16 %v136
    %v169 = vunpack.c.l.b16 %v137
    %v170 = vunpack.c.l.b16 %v138
    %v171 = vunpack.c.l.b16 %v139
    %v172 = vunpack.c.l.b16 %v140
    %v173 = vunpack.c.l.b16 %v141
    %v174 = vunpack.c.l.b16 %v142
    %v175 = vunpack.c.l.b16 %v143
    %v176 = vunpack.c.l.b16 %v144
    %v177 = vunpack.c.l.b16 %v145
    %v178 = vunpack.c.l.b16 %v146
    %v179 = vunpack.c.l.b16 %v147
    %v180 = vunpack.c.l.b16 %v148
    %v181 = vunpack.c.l.b16 %v149
    %v182 = vpack.c.b16 %v167, %v166
    %v183 = vpack.c.b16 %v169, %v168
    %v184 = vpack.c.b16 %v171, %v170
    %v185 = vpack.c.b16 %v173, %v172
    %v186 = vpack.c.b16 %v175, %v174
    %v187 = vpack.c.b16 %v177, %v176
    %v188 = vpack.c.b16 %v179, %v178
    %v189 = vpack.c.b16 %v181, %v180
    %v214 = vunpack.c.l.b16 %v97
    %v215 = vunpack.c.l.b16 %v98
    %v216 = vunpack.c.l.b16 %v99
    %v217 = vunpack.c.l.b16 %v100
    %v218 = vunpack.c.l.b16 %v101
    %v219 = vunpack.c.l.b16 %v102
    %v220 = vunpack.c.l.b16 %v103
    %v221 = vunpack.c.l.b16 %v104
    %v222 = vunpack.c.l.b16 %v105
    %v223 = vunpack.c.l.b16 %v106
    %v224 = vunpack.c.l.b16 %v107
    %v225 = vunpack.c.l.b16 %v108
    %v226 = vunpack.c.l.b16 %v109
    %v227 = vunpack.c.l.b16 %v110
    %v228 = vunpack.c.l.b16 %v111
    %v229 = vunpack.c.l.b16 %v112
    %v230 = vpack.c.b16 %v215, %v214
    %v231 = vpack.c.b16 %v217, %v216
    %v232 = vpack.c.b16 %v219, %v218
    %v233 = vpack.c.b16 %v221, %v220
    %v234 = vpack.c.b16 %v223, %v222
    %v235 = vpack.c.b16 %v225, %v224
    %v236 = vpack.c.b16 %v227, %v226
    %v237 = vpack.c.b16 %v229, %v228
    %246 = vmatpush.bf16.msra.mxu0 %v237
    %247 = vmatpush.bf16.msra.mxu0 %v236
    %248 = vmatpush.bf16.msra.mxu0 %v235
    %249 = vmatpush.bf16.msra.mxu0 %v234
    %250 = vmatpush.bf16.msra.mxu0 %v233
    %251 = vmatpush.bf16.msra.mxu0 %v232
    %252 = vmatpush.bf16.msra.mxu0 %v231
    %253 = vmatpush.bf16.msra.mxu0 %v230
    %254 = vmatmul.bf16.gmra.mxu0 %v182
    %v255 = vpop.f32.mrf.mxu0
    %v256 = vadd.f32 0.0, %v255
    %v257 = vpop.f32.mrf.mxu0
    %v258 = vadd.f32 0.0, %v257
    %259 = vmatmul.bf16.gmra.mxu0 %v183
    %v260 = vpop.f32.mrf.mxu0
    %v261 = vadd.f32 0.0, %v260
    %v262 = vpop.f32.mrf.mxu0
    %v263 = vadd.f32 0.0, %v262
    %264 = vmatmul.bf16.gmra.mxu0 %v184
    %v265 = vpop.f32.mrf.mxu0
    %v266 = vadd.f32 0.0, %v265
    %v267 = vpop.f32.mrf.mxu0
    %v268 = vadd.f32 0.0, %v267
    %269 = vmatmul.bf16.gmra.mxu0 %v185
    %v270 = vpop.f32.mrf.mxu0
    %v271 = vadd.f32 0.0, %v270
    %v272 = vpop.f32.mrf.mxu0
    %v273 = vadd.f32 0.0, %v272
    %274 = vmatmul.bf16.gmra.mxu0 %v186
    %v275 = vpop.f32.mrf.mxu0
    %v276 = vadd.f32 0.0, %v275
    %v277 = vpop.f32.mrf.mxu0
    %v278 = vadd.f32 0.0, %v277
    %279 = vmatmul.bf16.gmra.mxu0 %v187
    %v280 = vpop.f32.mrf.mxu0
    %v281 = vadd.f32 0.0, %v280
    %v282 = vpop.f32.mrf.mxu0
    %v283 = vadd.f32 0.0, %v282
    %284 = vmatmul.bf16.gmra.mxu0 %v188
    %v285 = vpop.f32.mrf.mxu0
    %v286 = vadd.f32 0.0, %v285
    %v287 = vpop.f32.mrf.mxu0
    %v288 = vadd.f32 0.0, %v287
    %289 = vmatmul.bf16.gmra.mxu0 %v189
    %v290 = vpop.f32.mrf.mxu0
    %v291 = vadd.f32 0.0, %v290
    %v292 = vpop.f32.mrf.mxu0
    %v293 = vadd.f32 0.0, %v292
    %294 = vdwg.mxu0
    %v295 = vpack.c.bf16 %v258, %v256
    %v296 = vpack.c.bf16 %v263, %v261
    %v297 = vpack.c.bf16 %v268, %v266
    %v298 = vpack.c.bf16 %v273, %v271
    %v299 = vpack.c.bf16 %v278, %v276
    %v300 = vpack.c.bf16 %v283, %v281
    %v301 = vpack.c.bf16 %v288, %v286
    %v302 = vpack.c.bf16 %v293, %v291
    %v304 = vperm.slane %v129, 0
    %v322 = vunpack.c.l.b16 %v113
    %v323 = vunpack.c.l.b16 %v114
    %v324 = vunpack.c.l.b16 %v115
    %v325 = vunpack.c.l.b16 %v116
    %v326 = vunpack.c.l.b16 %v117
    %v327 = vunpack.c.l.b16 %v118
    %v328 = vunpack.c.l.b16 %v119
    %v329 = vunpack.c.l.b16 %v120
    %v330 = vunpack.c.l.b16 %v121
    %v331 = vunpack.c.l.b16 %v122
    %v332 = vunpack.c.l.b16 %v123
    %v333 = vunpack.c.l.b16 %v124
    %v334 = vunpack.c.l.b16 %v125
    %v335 = vunpack.c.l.b16 %v126
    %v336 = vunpack.c.l.b16 %v127
    %v337 = vunpack.c.l.b16 %v128
    %v338 = vpack.c.b16 %v323, %v322
    %v339 = vpack.c.b16 %v325, %v324
    %v340 = vpack.c.b16 %v327, %v326
    %v341 = vpack.c.b16 %v329, %v328
    %v342 = vpack.c.b16 %v331, %v330
    %v343 = vpack.c.b16 %v333, %v332
    %v344 = vpack.c.b16 %v335, %v334
    %v345 = vpack.c.b16 %v337, %v336
    %354 = vmatpush.bf16.msra.mxu0 %v345
    %355 = vmatpush.bf16.msra.mxu0 %v344
    %356 = vmatpush.bf16.msra.mxu0 %v343
    %357 = vmatpush.bf16.msra.mxu0 %v342
    %358 = vmatpush.bf16.msra.mxu0 %v341
    %359 = vmatpush.bf16.msra.mxu0 %v340
    %360 = vmatpush.bf16.msra.mxu0 %v339
    %361 = vmatpush.bf16.msra.mxu0 %v338
    %362 = vmatmul.bf16.gmra.mxu0 %v295
    %v363 = vpop.f32.mrf.mxu0
    %v364 = vadd.f32 %v304, %v363
    %v365 = vpop.f32.mrf.mxu0
    %v366 = vadd.f32 %v304, %v365
    %367 = vmatmul.bf16.gmra.mxu0 %v296
    %v368 = vpop.f32.mrf.mxu0
    %v369 = vadd.f32 %v304, %v368
    %v370 = vpop.f32.mrf.mxu0
    %v371 = vadd.f32 %v304, %v370
    %372 = vmatmul.bf16.gmra.mxu0 %v297
    %v373 = vpop.f32.mrf.mxu0
    %v374 = vadd.f32 %v304, %v373
    %v375 = vpop.f32.mrf.mxu0
    %v376 = vadd.f32 %v304, %v375
    %377 = vmatmul.bf16.gmra.mxu0 %v298
    %v378 = vpop.f32.mrf.mxu0
    %v379 = vadd.f32 %v304, %v378
    %v380 = vpop.f32.mrf.mxu0
    %v381 = vadd.f32 %v304, %v380
    %382 = vmatmul.bf16.gmra.mxu0 %v299
    %v383 = vpop.f32.mrf.mxu0
    %v384 = vadd.f32 %v304, %v383
    %v385 = vpop.f32.mrf.mxu0
    %v386 = vadd.f32 %v304, %v385
    %387 = vmatmul.bf16.gmra.mxu0 %v300
    %v388 = vpop.f32.mrf.mxu0
    %v389 = vadd.f32 %v304, %v388
    %v390 = vpop.f32.mrf.mxu0
    %v391 = vadd.f32 %v304, %v390
    %392 = vmatmul.bf16.gmra.mxu0 %v301
    %v393 = vpop.f32.mrf.mxu0
    %v394 = vadd.f32 %v304, %v393
    %v395 = vpop.f32.mrf.mxu0
    %v396 = vadd.f32 %v304, %v395
    %397 = vmatmul.bf16.gmra.mxu0 %v302
    %v398 = vpop.f32.mrf.mxu0
    %v399 = vadd.f32 %v304, %v398
    %v400 = vpop.f32.mrf.mxu0
    %v401 = vadd.f32 %v304, %v400
    %402 = vdwg.mxu0
    %v403 = vmul.f32 %v364, 0.2
    %v404 = vmul.f32 %v366, 0.2
    %v405 = vmul.f32 %v369, 0.2
    %v406 = vmul.f32 %v371, 0.2
    %v407 = vmul.f32 %v374, 0.2
    %v408 = vmul.f32 %v376, 0.2
    %v409 = vmul.f32 %v379, 0.2
    %v410 = vmul.f32 %v381, 0.2
    %v411 = vmul.f32 %v384, 0.2
    %v412 = vmul.f32 %v386, 0.2
    %v413 = vmul.f32 %v389, 0.2
    %v414 = vmul.f32 %v391, 0.2
    %v415 = vmul.f32 %v394, 0.2
    %v416 = vmul.f32 %v396, 0.2
    %v417 = vmul.f32 %v399, 0.2
    %v418 = vmul.f32 %v401, 0.2
    %v419 = vmax.f32 %v364, %v403
    %v420 = vmax.f32 %v366, %v404
    %v421 = vmax.f32 %v369, %v405
    %v422 = vmax.f32 %v371, %v406
    %v423 = vmax.f32 %v374, %v407
    %v424 = vmax.f32 %v376, %v408
    %v425 = vmax.f32 %v379, %v409
    %v426 = vmax.f32 %v381, %v410
    %v427 = vmax.f32 %v384, %v411
    %v428 = vmax.f32 %v386, %v412
    %v429 = vmax.f32 %v389, %v413
    %v430 = vmax.f32 %v391, %v414
    %v431 = vmax.f32 %v394, %v415
    %v432 = vmax.f32 %v396, %v416
    %v433 = vmax.f32 %v399, %v417
    %v434 = vmax.f32 %v401, %v418
    %v435 = vpack.c.bf16 %v420, %v419
    %v436 = vpack.c.bf16 %v422, %v421
    %v437 = vpack.c.bf16 %v424, %v423
    %v438 = vpack.c.bf16 %v426, %v425
    %v439 = vpack.c.bf16 %v428, %v427
    %v440 = vpack.c.bf16 %v430, %v429
    %v441 = vpack.c.bf16 %v432, %v431
    %v442 = vpack.c.bf16 %v434, %v433
    %v443 = vld [vmem:[#allocation10] sm:$0xf]
    %v444 = vld [vmem:[#allocation10 + $0x4] sm:$0xf]
    %v445 = vld [vmem:[#allocation10 + $0x8] sm:$0xf]
    %v446 = vld [vmem:[#allocation10 + $0xc] sm:$0xf]
    %v447 = vld [vmem:[#allocation10 + $0x10] sm:$0xf]
    %v448 = vld [vmem:[#allocation10 + $0x14] sm:$0xf]
    %v449 = vld [vmem:[#allocation10 + $0x18] sm:$0xf]
    %v450 = vld [vmem:[#allocation10 + $0x1c] sm:$0xf]
    %v451 = vld [vmem:[#allocation10 + $0x20] sm:$0xf]
    %v452 = vld [vmem:[#allocation10 + $0x24] sm:$0xf]
    %v453 = vld [vmem:[#allocation10 + $0x28] sm:$0xf]
    %v454 = vld [vmem:[#allocation10 + $0x2c] sm:$0xf]
    %v455 = vld [vmem:[#allocation10 + $0x30] sm:$0xf]
    %v456 = vld [vmem:[#allocation10 + $0x34] sm:$0xf]
    %v457 = vld [vmem:[#allocation10 + $0x38] sm:$0xf]
    %v458 = vld [vmem:[#allocation10 + $0x3c] sm:$0xf]
    %v459 = vld [vmem:[%s6] sm:$0x1]
    %v476 = vunpack.c.l.b16 %v443
    %v477 = vunpack.c.l.b16 %v444
    %v478 = vunpack.c.l.b16 %v445
    %v479 = vunpack.c.l.b16 %v446
    %v480 = vunpack.c.l.b16 %v447
    %v481 = vunpack.c.l.b16 %v448
    %v482 = vunpack.c.l.b16 %v449
    %v483 = vunpack.c.l.b16 %v450
    %v484 = vunpack.c.l.b16 %v451
    %v485 = vunpack.c.l.b16 %v452
    %v486 = vunpack.c.l.b16 %v453
    %v487 = vunpack.c.l.b16 %v454
    %v488 = vunpack.c.l.b16 %v455
    %v489 = vunpack.c.l.b16 %v456
    %v490 = vunpack.c.l.b16 %v457
    %v491 = vunpack.c.l.b16 %v458
    %v492 = vpack.c.b16 %v477, %v476
    %v493 = vpack.c.b16 %v479, %v478
    %v494 = vpack.c.b16 %v481, %v480
    %v495 = vpack.c.b16 %v483, %v482
    %v496 = vpack.c.b16 %v485, %v484
    %v497 = vpack.c.b16 %v487, %v486
    %v498 = vpack.c.b16 %v489, %v488
    %v499 = vpack.c.b16 %v491, %v490
    %508 = vmatpush.bf16.msra.mxu0 %v499
    %509 = vmatpush.bf16.msra.mxu0 %v498
    %510 = vmatpush.bf16.msra.mxu0 %v497
    %511 = vmatpush.bf16.msra.mxu0 %v496
    %512 = vmatpush.bf16.msra.mxu0 %v495
    %513 = vmatpush.bf16.msra.mxu0 %v494
    %514 = vmatpush.bf16.msra.mxu0 %v493
    %515 = vmatpush.bf16.msra.mxu0 %v492
    %516 = vmatmul.bf16.gmra.mxu0 %v435
    %v517 = vpop.f32.mrf.mxu0
    %v518 = vadd.f32 0.0, %v517
    %v519 = vpop.f32.mrf.mxu0
    %v520 = vadd.f32 0.0, %v519
    %521 = vmatmul.bf16.gmra.mxu0 %v436
    %v522 = vpop.f32.mrf.mxu0
    %v523 = vadd.f32 0.0, %v522
    %v524 = vpop.f32.mrf.mxu0
    %v525 = vadd.f32 0.0, %v524
    %526 = vmatmul.bf16.gmra.mxu0 %v437
    %v527 = vpop.f32.mrf.mxu0
    %v528 = vadd.f32 0.0, %v527
    %v529 = vpop.f32.mrf.mxu0
    %v530 = vadd.f32 0.0, %v529
    %531 = vmatmul.bf16.gmra.mxu0 %v438
    %v532 = vpop.f32.mrf.mxu0
    %v533 = vadd.f32 0.0, %v532
    %v534 = vpop.f32.mrf.mxu0
    %v535 = vadd.f32 0.0, %v534
    %536 = vmatmul.bf16.gmra.mxu0 %v439
    %v537 = vpop.f32.mrf.mxu0
    %v538 = vadd.f32 0.0, %v537
    %v539 = vpop.f32.mrf.mxu0
    %v540 = vadd.f32 0.0, %v539
    %541 = vmatmul.bf16.gmra.mxu0 %v440
    %v542 = vpop.f32.mrf.mxu0
    %v543 = vadd.f32 0.0, %v542
    %v544 = vpop.f32.mrf.mxu0
    %v545 = vadd.f32 0.0, %v544
    %546 = vmatmul.bf16.gmra.mxu0 %v441
    %v547 = vpop.f32.mrf.mxu0
    %v548 = vadd.f32 0.0, %v547
    %v549 = vpop.f32.mrf.mxu0
    %v550 = vadd.f32 0.0, %v549
    %551 = vmatmul.bf16.gmra.mxu0 %v442
    %v552 = vpop.f32.mrf.mxu0
    %v553 = vadd.f32 0.0, %v552
    %v554 = vpop.f32.mrf.mxu0
    %v555 = vadd.f32 0.0, %v554
    %556 = vdwg.mxu0
    %s557 = sshll.u32 %s131, 4
    %558 = dma.done %s83, %s557
    %v559 = vld [vmem:[#allocation3] sm:$0xf]
    %v560 = vld [vmem:[#allocation3 + $0x4] sm:$0xf]
    %v561 = vld [vmem:[#allocation3 + $0x8] sm:$0xf]
    %v562 = vld [vmem:[#allocation3 + $0xc] sm:$0xf]
    %v563 = vld [vmem:[#allocation3 + $0x10] sm:$0xf]
    %v564 = vld [vmem:[#allocation3 + $0x14] sm:$0xf]
    %v565 = vld [vmem:[#allocation3 + $0x18] sm:$0xf]
    %v566 = vld [vmem:[#allocation3 + $0x1c] sm:$0xf]
    %v567 = vld [vmem:[#allocation3 + $0x20] sm:$0xf]
    %v568 = vld [vmem:[#allocation3 + $0x24] sm:$0xf]
    %v569 = vld [vmem:[#allocation3 + $0x28] sm:$0xf]
    %v570 = vld [vmem:[#allocation3 + $0x2c] sm:$0xf]
    %v571 = vld [vmem:[#allocation3 + $0x30] sm:$0xf]
    %v572 = vld [vmem:[#allocation3 + $0x34] sm:$0xf]
    %v573 = vld [vmem:[#allocation3 + $0x38] sm:$0xf]
    %v574 = vld [vmem:[#allocation3 + $0x3c] sm:$0xf]
    %v575 = vpack.c.bf16 %v520, %v518
    %v576 = vpack.c.bf16 %v525, %v523
    %v577 = vpack.c.bf16 %v530, %v528
    %v578 = vpack.c.bf16 %v535, %v533
    %v579 = vpack.c.bf16 %v540, %v538
    %v580 = vpack.c.bf16 %v545, %v543
    %v581 = vpack.c.bf16 %v550, %v548
    %v582 = vpack.c.bf16 %v555, %v553
    %v584 = vperm.slane %v459, 0
    %v602 = vunpack.c.l.b16 %v559
    %v603 = vunpack.c.l.b16 %v560
    %v604 = vunpack.c.l.b16 %v561
    %v605 = vunpack.c.l.b16 %v562
    %v606 = vunpack.c.l.b16 %v563
    %v607 = vunpack.c.l.b16 %v564
    %v608 = vunpack.c.l.b16 %v565
    %v609 = vunpack.c.l.b16 %v566
    %v610 = vunpack.c.l.b16 %v567
    %v611 = vunpack.c.l.b16 %v568
    %v612 = vunpack.c.l.b16 %v569
    %v613 = vunpack.c.l.b16 %v570
    %v614 = vunpack.c.l.b16 %v571
    %v615 = vunpack.c.l.b16 %v572
    %v616 = vunpack.c.l.b16 %v573
    %v617 = vunpack.c.l.b16 %v574
    %v618 = vpack.c.b16 %v603, %v602
    %v619 = vpack.c.b16 %v605, %v604
    %v620 = vpack.c.b16 %v607, %v606
    %v621 = vpack.c.b16 %v609, %v608
    %v622 = vpack.c.b16 %v611, %v610
    %v623 = vpack.c.b16 %v613, %v612
    %v624 = vpack.c.b16 %v615, %v614
    %v625 = vpack.c.b16 %v617, %v616
    %634 = vmatpush.bf16.msra.mxu0 %v582
    %635 = vmatpush.bf16.msra.mxu0 %v581
    %636 = vmatpush.bf16.msra.mxu0 %v580
    %637 = vmatpush.bf16.msra.mxu0 %v579
    %638 = vmatpush.bf16.msra.mxu0 %v578
    %639 = vmatpush.bf16.msra.mxu0 %v577
    %640 = vmatpush.bf16.msra.mxu0 %v576
    %641 = vmatpush.bf16.msra.mxu0 %v575
    %642 = vmatmul.bf16.gmra.mxu0 %v618
    %v643 = vpop.f32.mrf.mxu0
    %v644 = vadd.f32 %v584, %v643
    %v645 = vpop.f32.mrf.mxu0
    %v646 = vadd.f32 %v584, %v645
    %647 = vmatmul.bf16.gmra.mxu0 %v619
    %v648 = vpop.f32.mrf.mxu0
    %v649 = vadd.f32 %v584, %v648
    %v650 = vpop.f32.mrf.mxu0
    %v651 = vadd.f32 %v584, %v650
    %652 = vmatmul.bf16.gmra.mxu0 %v620
    %v653 = vpop.f32.mrf.mxu0
    %v654 = vadd.f32 %v584, %v653
    %v655 = vpop.f32.mrf.mxu0
    %v656 = vadd.f32 %v584, %v655
    %657 = vmatmul.bf16.gmra.mxu0 %v621
    %v658 = vpop.f32.mrf.mxu0
    %v659 = vadd.f32 %v584, %v658
    %v660 = vpop.f32.mrf.mxu0
    %v661 = vadd.f32 %v584, %v660
    %662 = vmatmul.bf16.gmra.mxu0 %v622
    %v663 = vpop.f32.mrf.mxu0
    %v664 = vadd.f32 %v584, %v663
    %v665 = vpop.f32.mrf.mxu0
    %v666 = vadd.f32 %v584, %v665
    %667 = vmatmul.bf16.gmra.mxu0 %v623
    %v668 = vpop.f32.mrf.mxu0
    %v669 = vadd.f32 %v584, %v668
    %v670 = vpop.f32.mrf.mxu0
    %v671 = vadd.f32 %v584, %v670
    %672 = vmatmul.bf16.gmra.mxu0 %v624
    %v673 = vpop.f32.mrf.mxu0
    %v674 = vadd.f32 %v584, %v673
    %v675 = vpop.f32.mrf.mxu0
    %v676 = vadd.f32 %v584, %v675
    %677 = vmatmul.bf16.gmra.mxu0 %v625
    %v678 = vpop.f32.mrf.mxu0
    %v679 = vadd.f32 %v584, %v678
    %v680 = vpop.f32.mrf.mxu0
    %v681 = vadd.f32 %v584, %v680
    %682 = vdwg.mxu0
    %v683 = vmul.f32 %v644, %v644
    %v684 = vmul.f32 %v646, %v646
    %v685 = vmul.f32 %v649, %v649
    %v686 = vmul.f32 %v651, %v651
    %v687 = vmul.f32 %v654, %v654
    %v688 = vmul.f32 %v656, %v656
    %v689 = vmul.f32 %v659, %v659
    %v690 = vmul.f32 %v661, %v661
    %v691 = vmul.f32 %v664, %v664
    %v692 = vmul.f32 %v666, %v666
    %v693 = vmul.f32 %v669, %v669
    %v694 = vmul.f32 %v671, %v671
    %v695 = vmul.f32 %v674, %v674
    %v696 = vmul.f32 %v676, %v676
    %v697 = vmul.f32 %v679, %v679
    %v698 = vmul.f32 %v681, %v681
    %699 = vadd.xlane.f32.xlu0 %v683
    %v700 = vpop.xlane.xlu0 %699
    %701 = vadd.xlane.f32.xlu0 %v684
    %v702 = vpop.xlane.xlu0 %701
    %703 = vadd.xlane.f32.xlu0 %v685
    %v704 = vpop.xlane.xlu0 %703
    %705 = vadd.xlane.f32.xlu0 %v686
    %v706 = vpop.xlane.xlu0 %705
    %707 = vadd.xlane.f32.xlu0 %v687
    %v708 = vpop.xlane.xlu0 %707
    %709 = vadd.xlane.f32.xlu0 %v688
    %v710 = vpop.xlane.xlu0 %709
    %711 = vadd.xlane.f32.xlu0 %v689
    %v712 = vpop.xlane.xlu0 %711
    %713 = vadd.xlane.f32.xlu0 %v690
    %v714 = vpop.xlane.xlu0 %713
    %715 = vadd.xlane.f32.xlu0 %v691
    %v716 = vpop.xlane.xlu0 %715
    %717 = vadd.xlane.f32.xlu0 %v692
    %v718 = vpop.xlane.xlu0 %717
    %719 = vadd.xlane.f32.xlu0 %v693
    %v720 = vpop.xlane.xlu0 %719
    %721 = vadd.xlane.f32.xlu0 %v694
    %v722 = vpop.xlane.xlu0 %721
    %723 = vadd.xlane.f32.xlu0 %v695
    %v724 = vpop.xlane.xlu0 %723
    %725 = vadd.xlane.f32.xlu0 %v696
    %v726 = vpop.xlane.xlu0 %725
    %727 = vadd.xlane.f32.xlu0 %v697
    %v728 = vpop.xlane.xlu0 %727
    %729 = vadd.xlane.f32.xlu0 %v698
    %v730 = vpop.xlane.xlu0 %729
    %v731 = vmax.f32 %v700, 1e-24
    %v732 = vmax.f32 %v702, 1e-24
    %v733 = vmax.f32 %v704, 1e-24
    %v734 = vmax.f32 %v706, 1e-24
    %v735 = vmax.f32 %v708, 1e-24
    %v736 = vmax.f32 %v710, 1e-24
    %v737 = vmax.f32 %v712, 1e-24
    %v738 = vmax.f32 %v714, 1e-24
    %v739 = vmax.f32 %v716, 1e-24
    %v740 = vmax.f32 %v718, 1e-24
    %v741 = vmax.f32 %v720, 1e-24
    %v742 = vmax.f32 %v722, 1e-24
    %v743 = vmax.f32 %v724, 1e-24
    %v744 = vmax.f32 %v726, 1e-24
    %v745 = vmax.f32 %v728, 1e-24
    %v746 = vmax.f32 %v730, 1e-24
    %v747 = vrsqrt.pop %v731
    %v748 = vmul.f32 %v747, %v731
    %v749 = vmul.f32 %v748, %v747
    %v750 = vmul.f32 0.5, %v749
    %v751 = vsub.f32 1.5, %v750
    %v752 = vmul.f32 %v747, %v751
    %vm753 = vweird.f32 %v731
    %vm754 = vweird.f32 %v747
    %vm755 = vmor %vm753, %vm754
    %v756 = vsel %vm755, %v747, %v752
    %v757 = vrsqrt.pop %v732
    %v758 = vmul.f32 %v757, %v732
    %v759 = vmul.f32 %v758, %v757
    %v760 = vmul.f32 0.5, %v759
    %v761 = vsub.f32 1.5, %v760
    %v762 = vmul.f32 %v757, %v761
    %vm763 = vweird.f32 %v732
    %vm764 = vweird.f32 %v757
    %vm765 = vmor %vm763, %vm764
    %v766 = vsel %vm765, %v757, %v762
    %v767 = vrsqrt.pop %v733
    %v768 = vmul.f32 %v767, %v733
    %v769 = vmul.f32 %v768, %v767
    %v770 = vmul.f32 0.5, %v769
    %v771 = vsub.f32 1.5, %v770
    %v772 = vmul.f32 %v767, %v771
    %vm773 = vweird.f32 %v733
    %vm774 = vweird.f32 %v767
    %vm775 = vmor %vm773, %vm774
    %v776 = vsel %vm775, %v767, %v772
    %v777 = vrsqrt.pop %v734
    %v778 = vmul.f32 %v777, %v734
    %v779 = vmul.f32 %v778, %v777
    %v780 = vmul.f32 0.5, %v779
    %v781 = vsub.f32 1.5, %v780
    %v782 = vmul.f32 %v777, %v781
    %vm783 = vweird.f32 %v734
    %vm784 = vweird.f32 %v777
    %vm785 = vmor %vm783, %vm784
    %v786 = vsel %vm785, %v777, %v782
    %v787 = vrsqrt.pop %v735
    %v788 = vmul.f32 %v787, %v735
    %v789 = vmul.f32 %v788, %v787
    %v790 = vmul.f32 0.5, %v789
    %v791 = vsub.f32 1.5, %v790
    %v792 = vmul.f32 %v787, %v791
    %vm793 = vweird.f32 %v735
    %vm794 = vweird.f32 %v787
    %vm795 = vmor %vm793, %vm794
    %v796 = vsel %vm795, %v787, %v792
    %v797 = vrsqrt.pop %v736
    %v798 = vmul.f32 %v797, %v736
    %v799 = vmul.f32 %v798, %v797
    %v800 = vmul.f32 0.5, %v799
    %v801 = vsub.f32 1.5, %v800
    %v802 = vmul.f32 %v797, %v801
    %vm803 = vweird.f32 %v736
    %vm804 = vweird.f32 %v797
    %vm805 = vmor %vm803, %vm804
    %v806 = vsel %vm805, %v797, %v802
    %v807 = vrsqrt.pop %v737
    %v808 = vmul.f32 %v807, %v737
    %v809 = vmul.f32 %v808, %v807
    %v810 = vmul.f32 0.5, %v809
    %v811 = vsub.f32 1.5, %v810
    %v812 = vmul.f32 %v807, %v811
    %vm813 = vweird.f32 %v737
    %vm814 = vweird.f32 %v807
    %vm815 = vmor %vm813, %vm814
    %v816 = vsel %vm815, %v807, %v812
    %v817 = vrsqrt.pop %v738
    %v818 = vmul.f32 %v817, %v738
    %v819 = vmul.f32 %v818, %v817
    %v820 = vmul.f32 0.5, %v819
    %v821 = vsub.f32 1.5, %v820
    %v822 = vmul.f32 %v817, %v821
    %vm823 = vweird.f32 %v738
    %vm824 = vweird.f32 %v817
    %vm825 = vmor %vm823, %vm824
    %v826 = vsel %vm825, %v817, %v822
    %v827 = vrsqrt.pop %v739
    %v828 = vmul.f32 %v827, %v739
    %v829 = vmul.f32 %v828, %v827
    %v830 = vmul.f32 0.5, %v829
    %v831 = vsub.f32 1.5, %v830
    %v832 = vmul.f32 %v827, %v831
    %vm833 = vweird.f32 %v739
    %vm834 = vweird.f32 %v827
    %vm835 = vmor %vm833, %vm834
    %v836 = vsel %vm835, %v827, %v832
    %v837 = vrsqrt.pop %v740
    %v838 = vmul.f32 %v837, %v740
    %v839 = vmul.f32 %v838, %v837
    %v840 = vmul.f32 0.5, %v839
    %v841 = vsub.f32 1.5, %v840
    %v842 = vmul.f32 %v837, %v841
    %vm843 = vweird.f32 %v740
    %vm844 = vweird.f32 %v837
    %vm845 = vmor %vm843, %vm844
    %v846 = vsel %vm845, %v837, %v842
    %v847 = vrsqrt.pop %v741
    %v848 = vmul.f32 %v847, %v741
    %v849 = vmul.f32 %v848, %v847
    %v850 = vmul.f32 0.5, %v849
    %v851 = vsub.f32 1.5, %v850
    %v852 = vmul.f32 %v847, %v851
    %vm853 = vweird.f32 %v741
    %vm854 = vweird.f32 %v847
    %vm855 = vmor %vm853, %vm854
    %v856 = vsel %vm855, %v847, %v852
    %v857 = vrsqrt.pop %v742
    %v858 = vmul.f32 %v857, %v742
    %v859 = vmul.f32 %v858, %v857
    %v860 = vmul.f32 0.5, %v859
    %v861 = vsub.f32 1.5, %v860
    %v862 = vmul.f32 %v857, %v861
    %vm863 = vweird.f32 %v742
    %vm864 = vweird.f32 %v857
    %vm865 = vmor %vm863, %vm864
    %v866 = vsel %vm865, %v857, %v862
    %v867 = vrsqrt.pop %v743
    %v868 = vmul.f32 %v867, %v743
    %v869 = vmul.f32 %v868, %v867
    %v870 = vmul.f32 0.5, %v869
    %v871 = vsub.f32 1.5, %v870
    %v872 = vmul.f32 %v867, %v871
    %vm873 = vweird.f32 %v743
    %vm874 = vweird.f32 %v867
    %vm875 = vmor %vm873, %vm874
    %v876 = vsel %vm875, %v867, %v872
    %v877 = vrsqrt.pop %v744
    %v878 = vmul.f32 %v877, %v744
    %v879 = vmul.f32 %v878, %v877
    %v880 = vmul.f32 0.5, %v879
    %v881 = vsub.f32 1.5, %v880
    %v882 = vmul.f32 %v877, %v881
    %vm883 = vweird.f32 %v744
    %vm884 = vweird.f32 %v877
    %vm885 = vmor %vm883, %vm884
    %v886 = vsel %vm885, %v877, %v882
    %v887 = vrsqrt.pop %v745
    %v888 = vmul.f32 %v887, %v745
    %v889 = vmul.f32 %v888, %v887
    %v890 = vmul.f32 0.5, %v889
    %v891 = vsub.f32 1.5, %v890
    %v892 = vmul.f32 %v887, %v891
    %vm893 = vweird.f32 %v745
    %vm894 = vweird.f32 %v887
    %vm895 = vmor %vm893, %vm894
    %v896 = vsel %vm895, %v887, %v892
    %v897 = vrsqrt.pop %v746
    %v898 = vmul.f32 %v897, %v746
    %v899 = vmul.f32 %v898, %v897
    %v900 = vmul.f32 0.5, %v899
    %v901 = vsub.f32 1.5, %v900
    %v902 = vmul.f32 %v897, %v901
    %vm903 = vweird.f32 %v746
    %vm904 = vweird.f32 %v897
    %vm905 = vmor %vm903, %vm904
    %v906 = vsel %vm905, %v897, %v902
    %v907 = vmul.f32 %v644, %v756
    %v908 = vmul.f32 %v646, %v766
    %v909 = vmul.f32 %v649, %v776
    %v910 = vmul.f32 %v651, %v786
    %v911 = vmul.f32 %v654, %v796
    %v912 = vmul.f32 %v656, %v806
    %v913 = vmul.f32 %v659, %v816
    %v914 = vmul.f32 %v661, %v826
    %v915 = vmul.f32 %v664, %v836
    %v916 = vmul.f32 %v666, %v846
    %v917 = vmul.f32 %v669, %v856
    %v918 = vmul.f32 %v671, %v866
    %v919 = vmul.f32 %v674, %v876
    %v920 = vmul.f32 %v676, %v886
    %v921 = vmul.f32 %v679, %v896
    %v922 = vmul.f32 %v681, %v906
    %923 = vst [vmem:[#allocation11] sm:$0xff] %v907
    %924 = vst [vmem:[#allocation11 + $0x8] sm:$0xff] %v908
    %925 = vst [vmem:[#allocation11 + $0x10] sm:$0xff] %v909
    %926 = vst [vmem:[#allocation11 + $0x18] sm:$0xff] %v910
    %927 = vst [vmem:[#allocation11 + $0x20] sm:$0xff] %v911
    %928 = vst [vmem:[#allocation11 + $0x28] sm:$0xff] %v912
    %929 = vst [vmem:[#allocation11 + $0x30] sm:$0xff] %v913
    %930 = vst [vmem:[#allocation11 + $0x38] sm:$0xff] %v914
    %931 = vst [vmem:[#allocation11 + $0x40] sm:$0xff] %v915
    %932 = vst [vmem:[#allocation11 + $0x48] sm:$0xff] %v916
    %933 = vst [vmem:[#allocation11 + $0x50] sm:$0xff] %v917
    %934 = vst [vmem:[#allocation11 + $0x58] sm:$0xff] %v918
    %935 = vst [vmem:[#allocation11 + $0x60] sm:$0xff] %v919
    %936 = vst [vmem:[#allocation11 + $0x68] sm:$0xff] %v920
    %937 = vst [vmem:[#allocation11 + $0x70] sm:$0xff] %v921
    %938 = vst [vmem:[#allocation11 + $0x78] sm:$0xff] %v922
    // Predicated region
    $region42: #{tpu_custom_call.1} parent=1 // pred_check
      _
    $region43: #{tpu_custom_call.1} parent=1 // pred_check_branch
      %940 = sbr.rel (0) target = $region45
    $region44: #{tpu_custom_call.1} parent=1 // pred_region
      %942 = vsyncadd [#allocation7], 0
      %s943 = sshll.u32 [#allocation11], 4
      %s944 = int_to_ptr.vmem [resolvable:$true] %s943
      %s945 = sshll.u32 %s7, 4
      %s946 = int_to_ptr.hbm [resolvable:$true] %s945
      %951 = dma.vmem_to_hbm [thread:$0]  %s944, 2048, %s946, [#allocation7], 128, 128, 8
    $region45: #{tpu_custom_call.1} parent=1 // pred_fallthru
      _
    // Predicated region
    $region46: #{tpu_custom_call.1} parent=1 // pred_check
      _
    $region47: #{tpu_custom_call.1} parent=1 // pred_check_branch
      %953 = sbr.rel (0) target = $region49
    $region48: #{tpu_custom_call.1} parent=1 // pred_region
      %955 = dma.done [#allocation7], 2048
    $region49: #{tpu_custom_call.1} parent=1 // pred_fallthru
      _
    %956 = vsyncpa [#allocation6], 1
    %957 = vsyncpa [#allocation9], 1
    %958 = vsyncpa [#allocation7], 1
  %959 = vsyncmov [#allocation4]
  %s960 = vpop.sfrf %959
  %p961 = scmp.eq.s32.totalorder %s960, 0
  %p962 = pneg %p961
  %964 = shalt.err (%p962)
  %s965 = scalar_lea.sflag [#allocation4], 1
  %966 = vsyncmov %s965
  %s967 = vpop.sfrf %966
  %p968 = scmp.eq.s32.totalorder %s967, 0
  %p969 = pneg %p968
  %971 = shalt.err (%p969)

</llo_original>
